<compile_context>
chip_gen: v7x
topology: tpu7x:2x2x1
jax: 0.10.0
libtpu: 0.0.40
codegen_flags: <defaults>
</compile_context>

<pallas_src>
import jax
import jax.numpy as jnp
from jax.experimental import pallas as pl
from jax.experimental.pallas import tpu as pltpu

_LANE = 128


def _cdiv(a, b):
    return -(-a // b)


def _round_up(a, b):
    return _cdiv(a, b) * b


def _fused_adaptor_backbone_kernel(w_ref, b_ref, x_ref, o_ref):
    # w_ref: (Cin, C2) fused weight in SMEM        (W = w1 @ w2)
    # b_ref: (C2,)     fused bias   in SMEM        (B = b1 @ w2 + b2)
    # x_ref: (1, Cin, TILE_R, 128) VMEM block  -- spatial packed on sublanes+lanes
    # o_ref: (1, C2,  TILE_R, 128) VMEM block
    cin = x_ref.shape[1]
    c2 = o_ref.shape[1]
    for j in range(c2):                                    # static unroll over out channels
        acc = x_ref[0, 0].astype(jnp.float32) * w_ref[0, j] + b_ref[j]   # (TILE_R,128) dense
        for c in range(1, cin):                            # static unroll over in channels
            acc = acc + x_ref[0, c].astype(jnp.float32) * w_ref[c, j]
        o_ref[0, j] = jnp.maximum(acc, 0.0).astype(o_ref.dtype)          # dense full-vreg store


def _choose_tile_rows(R, N, max_rows=1024):
    """Row-block size: multiple of 8 (or full extent), VMEM-budget-capped, and split into
    >= 2 blocks when N == 1 so both v7x TensorCores get grid steps."""
    if R <= max_rows and (N >= 2 or R <= 8):
        return R                                            # single full-extent block (legal)
    target = max_rows
    if N == 1:
        target = min(target, _round_up(_cdiv(R, 2), 8))     # at least 2 row blocks
    tile = min(target, _round_up(R, 8))
    return max(8, (tile // 8) * 8)                          # multiple of 8 -> legal ragged grid


def model_with_adaptor(x_nchw, w1, b1, w2, b2, *, max_tile_rows=1024):
    """x_nchw: (N, Cin, H, W) float32.  Returns (N, C2, H, W) float32."""
    N, Cin, H, W = x_nchw.shape
    C2 = w2.shape[1]

    # Fuse the two affine stages (valid only because the stand-in backbone is purely affine;
    # a real nonlinear backbone would require materializing the adaptor output instead).
    w_fused = w1.astype(jnp.float32) @ w2.astype(jnp.float32)                          # (Cin, C2)
    b_fused = b1.astype(jnp.float32) @ w2.astype(jnp.float32) + b2.astype(jnp.float32)  # (C2,)

    S = H * W
    S128 = _round_up(S, _LANE)           # pad only to the next multiple of 128 (often a no-op)
    R = S128 // _LANE

    x3 = x_nchw.reshape(N, Cin, S)
    if S128 != S:
        x3 = jnp.pad(x3, ((0, 0), (0, 0), (0, S128 - S)))
    x4 = x3.reshape(N, Cin, R, _LANE)    # spatial on (sublane, lane)

    tile_r = _choose_tile_rows(R, N, max_tile_rows)
    grid = (N, pl.cdiv(R, tile_r))       # ragged last row-block handled by Pallas

    out4 = pl.pallas_call(
        _fused_adaptor_backbone_kernel,
        out_shape=jax.ShapeDtypeStruct((N, C2, R, _LANE), jnp.float32),
        grid=grid,
        in_specs=[
            pl.BlockSpec(memory_space=pltpu.MemorySpace.SMEM),   # fused weight (Cin, C2)
            pl.BlockSpec(memory_space=pltpu.MemorySpace.SMEM),   # fused bias (C2,)
            pl.BlockSpec((1, Cin, tile_r, _LANE), lambda n, r: (n, 0, r, 0)),
        ],
        out_specs=pl.BlockSpec((1, C2, tile_r, _LANE), lambda n, r: (n, 0, r, 0)),
        compiler_params=pltpu.CompilerParams(
            dimension_semantics=("parallel", "parallel"),
            vmem_limit_bytes=32 * 1024 * 1024),   # 12 MiB double-buffered working set + headroom
    )(w_fused, b_fused, x4)

    out3 = out4.reshape(N, C2, S128)
    if S128 != S:
        out3 = out3[:, :, :S]
    return out3.reshape(N, C2, H, W)


def _init_params(key, num_inp_feats=4, out_channels=3, backbone_out=8):
    """Deterministic init matching PyTorch Conv2d default (uniform +/- 1/sqrt(fan_in))."""
    k1, k2, k3, k4 = jax.random.split(key, 4)
    bound1 = 1.0 / jnp.sqrt(float(num_inp_feats))
    bound2 = 1.0 / jnp.sqrt(float(out_channels))
    # 1x1 conv weights stored in matmul form: (Cin, Cout)
    w1 = jax.random.uniform(k1, (num_inp_feats, out_channels), jnp.float32, -bound1, bound1)
    b1 = jax.random.uniform(k2, (out_channels,), jnp.float32, -bound1, bound1)
    w2 = jax.random.uniform(k3, (out_channels, backbone_out), jnp.float32, -bound2, bound2)
    b2 = jax.random.uniform(k4, (backbone_out,), jnp.float32, -bound2, bound2)
    return w1, b1, w2, b2


if __name__ == "__main__":
    key = jax.random.PRNGKey(0)
    kx, kp = jax.random.split(key)

    N, Cin, H, W = 2, 4, 16, 16            # num_inp_feats=4, small spatial
    x = jax.random.normal(kx, (N, Cin, H, W), jnp.float32)
    w1, b1, w2, b2 = _init_params(kp, num_inp_feats=Cin, out_channels=3, backbone_out=8)

    out = model_with_adaptor(x, w1, b1, w2, b2)
    out = jax.block_until_ready(out)

    # Reference: the unfused two-stage math (adaptor conv -> backbone conv -> ReLU).
    x_flat = jnp.transpose(x, (0, 2, 3, 1)).reshape(-1, Cin)
    ref = jnp.maximum((x_flat @ w1 + b1) @ w2 + b2, 0.0)
    ref = jnp.transpose(ref.reshape(N, H, W, -1), (0, 3, 1, 2))

    assert out.shape == (N, 8, H, W)
    assert jnp.allclose(out, ref, atol=1e-5, rtol=1e-5)

    print("KERNEL_OK")
</pallas_src>

<mosaic_0001>
module attributes {stable_mosaic.version = 11 : i64} {
  func.func @_fused_adaptor_backbone_kernel(%arg0: i32, %arg1: i32, %arg2: memref<4x8xf32, #tpu.memory_space<smem>>, %arg3: memref<8xf32, #tpu.memory_space<smem>>, %arg4: memref<1x4x2x128xf32, #tpu.memory_space<vmem>>, %arg5: memref<1x8x2x128xf32, #tpu.memory_space<vmem>>) attributes {dimension_semantics = [#tpu.dimension_semantics<parallel>, #tpu.dimension_semantics<parallel>], iteration_bounds = array<i64: 2, 1>, scalar_prefetch = 0 : i64, scratch_operands = 0 : i64, tpu.core_type = #tpu.core_type<tc>, window_params = [{transform_indices = @transform_0, window_bounds = array<i64: 4, 8>}, {transform_indices = @transform_1, window_bounds = array<i64: 8>}, {transform_indices = @transform_2, window_bounds = array<i64: 1, 4, 2, 128>}, {transform_indices = @transform_3, window_bounds = array<i64: 1, 8, 2, 128>}]} {
    %c0 = arith.constant 0 : index
    %c0_0 = arith.constant 0 : index
    %c0_1 = arith.constant 0 : index
    %c0_2 = arith.constant 0 : index
    %0 = vector.load %arg4[%c0, %c0_0, %c0_1, %c0_2] : memref<1x4x2x128xf32, #tpu.memory_space<vmem>>, vector<1x1x2x128xf32>
    %1 = vector.shape_cast %0 : vector<1x1x2x128xf32> to vector<2x128xf32>
    %c0_3 = arith.constant 0 : index
    %c0_4 = arith.constant 0 : index
    %2 = memref.load %arg2[%c0_3, %c0_4] : memref<4x8xf32, #tpu.memory_space<smem>>
    %3 = vector.broadcast %2 : f32 to vector<2x128xf32>
    %4 = arith.mulf %1, %3 : vector<2x128xf32>
    %c0_5 = arith.constant 0 : index
    %5 = memref.load %arg3[%c0_5] : memref<8xf32, #tpu.memory_space<smem>>
    %6 = vector.broadcast %5 : f32 to vector<2x128xf32>
    %7 = arith.addf %4, %6 : vector<2x128xf32>
    %c0_6 = arith.constant 0 : index
    %c1 = arith.constant 1 : index
    %c0_7 = arith.constant 0 : index
    %c0_8 = arith.constant 0 : index
    %8 = vector.load %arg4[%c0_6, %c1, %c0_7, %c0_8] : memref<1x4x2x128xf32, #tpu.memory_space<vmem>>, vector<1x1x2x128xf32>
    %9 = vector.shape_cast %8 : vector<1x1x2x128xf32> to vector<2x128xf32>
    %c1_9 = arith.constant 1 : index
    %c0_10 = arith.constant 0 : index
    %10 = memref.load %arg2[%c1_9, %c0_10] : memref<4x8xf32, #tpu.memory_space<smem>>
    %11 = vector.broadcast %10 : f32 to vector<2x128xf32>
    %12 = arith.mulf %9, %11 : vector<2x128xf32>
    %13 = arith.addf %7, %12 : vector<2x128xf32>
    %c0_11 = arith.constant 0 : index
    %c2 = arith.constant 2 : index
    %c0_12 = arith.constant 0 : index
    %c0_13 = arith.constant 0 : index
    %14 = vector.load %arg4[%c0_11, %c2, %c0_12, %c0_13] : memref<1x4x2x128xf32, #tpu.memory_space<vmem>>, vector<1x1x2x128xf32>
    %15 = vector.shape_cast %14 : vector<1x1x2x128xf32> to vector<2x128xf32>
    %c2_14 = arith.constant 2 : index
    %c0_15 = arith.constant 0 : index
    %16 = memref.load %arg2[%c2_14, %c0_15] : memref<4x8xf32, #tpu.memory_space<smem>>
    %17 = vector.broadcast %16 : f32 to vector<2x128xf32>
    %18 = arith.mulf %15, %17 : vector<2x128xf32>
    %19 = arith.addf %13, %18 : vector<2x128xf32>
    %c0_16 = arith.constant 0 : index
    %c3 = arith.constant 3 : index
    %c0_17 = arith.constant 0 : index
    %c0_18 = arith.constant 0 : index
    %20 = vector.load %arg4[%c0_16, %c3, %c0_17, %c0_18] : memref<1x4x2x128xf32, #tpu.memory_space<vmem>>, vector<1x1x2x128xf32>
    %21 = vector.shape_cast %20 : vector<1x1x2x128xf32> to vector<2x128xf32>
    %c3_19 = arith.constant 3 : index
    %c0_20 = arith.constant 0 : index
    %22 = memref.load %arg2[%c3_19, %c0_20] : memref<4x8xf32, #tpu.memory_space<smem>>
    %23 = vector.broadcast %22 : f32 to vector<2x128xf32>
    %24 = arith.mulf %21, %23 : vector<2x128xf32>
    %25 = arith.addf %19, %24 : vector<2x128xf32>
    %cst = arith.constant 0.000000e+00 : f32
    %26 = vector.broadcast %cst : f32 to vector<2x128xf32>
    %27 = arith.maximumf %25, %26 : vector<2x128xf32>
    %c0_21 = arith.constant 0 : index
    %c0_22 = arith.constant 0 : index
    %c0_23 = arith.constant 0 : index
    %c0_24 = arith.constant 0 : index
    %28 = vector.load %arg5[%c0_21, %c0_22, %c0_23, %c0_24] : memref<1x8x2x128xf32, #tpu.memory_space<vmem>>, vector<1x1x2x128xf32>
    %29 = vector.shape_cast %28 : vector<1x1x2x128xf32> to vector<2x128xf32>
    %30 = vector.shape_cast %27 : vector<2x128xf32> to vector<1x1x2x128xf32>
    tpu.vector_store %arg5[%c0_21, %c0_22, %c0_23, %c0_24], %30 {strides = array<i32>} : memref<1x8x2x128xf32, #tpu.memory_space<vmem>>, vector<1x1x2x128xf32>,
    %c0_25 = arith.constant 0 : index
    %c0_26 = arith.constant 0 : index
    %c0_27 = arith.constant 0 : index
    %c0_28 = arith.constant 0 : index
    %31 = vector.load %arg4[%c0_25, %c0_26, %c0_27, %c0_28] : memref<1x4x2x128xf32, #tpu.memory_space<vmem>>, vector<1x1x2x128xf32>
    %32 = vector.shape_cast %31 : vector<1x1x2x128xf32> to vector<2x128xf32>
    %c0_29 = arith.constant 0 : index
    %c1_30 = arith.constant 1 : index
    %33 = memref.load %arg2[%c0_29, %c1_30] : memref<4x8xf32, #tpu.memory_space<smem>>
    %34 = vector.broadcast %33 : f32 to vector<2x128xf32>
    %35 = arith.mulf %32, %34 : vector<2x128xf32>
    %c1_31 = arith.constant 1 : index
    %36 = memref.load %arg3[%c1_31] : memref<8xf32, #tpu.memory_space<smem>>
    %37 = vector.broadcast %36 : f32 to vector<2x128xf32>
    %38 = arith.addf %35, %37 : vector<2x128xf32>
    %c0_32 = arith.constant 0 : index
    %c1_33 = arith.constant 1 : index
    %c0_34 = arith.constant 0 : index
    %c0_35 = arith.constant 0 : index
    %39 = vector.load %arg4[%c0_32, %c1_33, %c0_34, %c0_35] : memref<1x4x2x128xf32, #tpu.memory_space<vmem>>, vector<1x1x2x128xf32>
    %40 = vector.shape_cast %39 : vector<1x1x2x128xf32> to vector<2x128xf32>
    %c1_36 = arith.constant 1 : index
    %c1_37 = arith.constant 1 : index
    %41 = memref.load %arg2[%c1_36, %c1_37] : memref<4x8xf32, #tpu.memory_space<smem>>
    %42 = vector.broadcast %41 : f32 to vector<2x128xf32>
    %43 = arith.mulf %40, %42 : vector<2x128xf32>
    %44 = arith.addf %38, %43 : vector<2x128xf32>
    %c0_38 = arith.constant 0 : index
    %c2_39 = arith.constant 2 : index
    %c0_40 = arith.constant 0 : index
    %c0_41 = arith.constant 0 : index
    %45 = vector.load %arg4[%c0_38, %c2_39, %c0_40, %c0_41] : memref<1x4x2x128xf32, #tpu.memory_space<vmem>>, vector<1x1x2x128xf32>
    %46 = vector.shape_cast %45 : vector<1x1x2x128xf32> to vector<2x128xf32>
    %c2_42 = arith.constant 2 : index
    %c1_43 = arith.constant 1 : index
    %47 = memref.load %arg2[%c2_42, %c1_43] : memref<4x8xf32, #tpu.memory_space<smem>>
    %48 = vector.broadcast %47 : f32 to vector<2x128xf32>
    %49 = arith.mulf %46, %48 : vector<2x128xf32>
    %50 = arith.addf %44, %49 : vector<2x128xf32>
    %c0_44 = arith.constant 0 : index
    %c3_45 = arith.constant 3 : index
    %c0_46 = arith.constant 0 : index
    %c0_47 = arith.constant 0 : index
    %51 = vector.load %arg4[%c0_44, %c3_45, %c0_46, %c0_47] : memref<1x4x2x128xf32, #tpu.memory_space<vmem>>, vector<1x1x2x128xf32>
    %52 = vector.shape_cast %51 : vector<1x1x2x128xf32> to vector<2x128xf32>
    %c3_48 = arith.constant 3 : index
    %c1_49 = arith.constant 1 : index
    %53 = memref.load %arg2[%c3_48, %c1_49] : memref<4x8xf32, #tpu.memory_space<smem>>
    %54 = vector.broadcast %53 : f32 to vector<2x128xf32>
    %55 = arith.mulf %52, %54 : vector<2x128xf32>
    %56 = arith.addf %50, %55 : vector<2x128xf32>
    %cst_50 = arith.constant 0.000000e+00 : f32
    %57 = vector.broadcast %cst_50 : f32 to vector<2x128xf32>
    %58 = arith.maximumf %56, %57 : vector<2x128xf32>
    %c0_51 = arith.constant 0 : index
    %c1_52 = arith.constant 1 : index
    %c0_53 = arith.constant 0 : index
    %c0_54 = arith.constant 0 : index
    %59 = vector.load %arg5[%c0_51, %c1_52, %c0_53, %c0_54] : memref<1x8x2x128xf32, #tpu.memory_space<vmem>>, vector<1x1x2x128xf32>
    %60 = vector.shape_cast %59 : vector<1x1x2x128xf32> to vector<2x128xf32>
    %61 = vector.shape_cast %58 : vector<2x128xf32> to vector<1x1x2x128xf32>
    tpu.vector_store %arg5[%c0_51, %c1_52, %c0_53, %c0_54], %61 {strides = array<i32>} : memref<1x8x2x128xf32, #tpu.memory_space<vmem>>, vector<1x1x2x128xf32>,
    %c0_55 = arith.constant 0 : index
    %c0_56 = arith.constant 0 : index
    %c0_57 = arith.constant 0 : index
    %c0_58 = arith.constant 0 : index
    %62 = vector.load %arg4[%c0_55, %c0_56, %c0_57, %c0_58] : memref<1x4x2x128xf32, #tpu.memory_space<vmem>>, vector<1x1x2x128xf32>
    %63 = vector.shape_cast %62 : vector<1x1x2x128xf32> to vector<2x128xf32>
    %c0_59 = arith.constant 0 : index
    %c2_60 = arith.constant 2 : index
    %64 = memref.load %arg2[%c0_59, %c2_60] : memref<4x8xf32, #tpu.memory_space<smem>>
    %65 = vector.broadcast %64 : f32 to vector<2x128xf32>
    %66 = arith.mulf %63, %65 : vector<2x128xf32>
    %c2_61 = arith.constant 2 : index
    %67 = memref.load %arg3[%c2_61] : memref<8xf32, #tpu.memory_space<smem>>
    %68 = vector.broadcast %67 : f32 to vector<2x128xf32>
    %69 = arith.addf %66, %68 : vector<2x128xf32>
    %c0_62 = arith.constant 0 : index
    %c1_63 = arith.constant 1 : index
    %c0_64 = arith.constant 0 : index
    %c0_65 = arith.constant 0 : index
    %70 = vector.load %arg4[%c0_62, %c1_63, %c0_64, %c0_65] : memref<1x4x2x128xf32, #tpu.memory_space<vmem>>, vector<1x1x2x128xf32>
    %71 = vector.shape_cast %70 : vector<1x1x2x128xf32> to vector<2x128xf32>
    %c1_66 = arith.constant 1 : index
    %c2_67 = arith.constant 2 : index
    %72 = memref.load %arg2[%c1_66, %c2_67] : memref<4x8xf32, #tpu.memory_space<smem>>
    %73 = vector.broadcast %72 : f32 to vector<2x128xf32>
    %74 = arith.mulf %71, %73 : vector<2x128xf32>
    %75 = arith.addf %69, %74 : vector<2x128xf32>
    %c0_68 = arith.constant 0 : index
    %c2_69 = arith.constant 2 : index
    %c0_70 = arith.constant 0 : index
    %c0_71 = arith.constant 0 : index
    %76 = vector.load %arg4[%c0_68, %c2_69, %c0_70, %c0_71] : memref<1x4x2x128xf32, #tpu.memory_space<vmem>>, vector<1x1x2x128xf32>
    %77 = vector.shape_cast %76 : vector<1x1x2x128xf32> to vector<2x128xf32>
    %c2_72 = arith.constant 2 : index
    %c2_73 = arith.constant 2 : index
    %78 = memref.load %arg2[%c2_72, %c2_73] : memref<4x8xf32, #tpu.memory_space<smem>>
    %79 = vector.broadcast %78 : f32 to vector<2x128xf32>
    %80 = arith.mulf %77, %79 : vector<2x128xf32>
    %81 = arith.addf %75, %80 : vector<2x128xf32>
    %c0_74 = arith.constant 0 : index
    %c3_75 = arith.constant 3 : index
    %c0_76 = arith.constant 0 : index
    %c0_77 = arith.constant 0 : index
    %82 = vector.load %arg4[%c0_74, %c3_75, %c0_76, %c0_77] : memref<1x4x2x128xf32, #tpu.memory_space<vmem>>, vector<1x1x2x128xf32>
    %83 = vector.shape_cast %82 : vector<1x1x2x128xf32> to vector<2x128xf32>
    %c3_78 = arith.constant 3 : index
    %c2_79 = arith.constant 2 : index
    %84 = memref.load %arg2[%c3_78, %c2_79] : memref<4x8xf32, #tpu.memory_space<smem>>
    %85 = vector.broadcast %84 : f32 to vector<2x128xf32>
    %86 = arith.mulf %83, %85 : vector<2x128xf32>
    %87 = arith.addf %81, %86 : vector<2x128xf32>
    %cst_80 = arith.constant 0.000000e+00 : f32
    %88 = vector.broadcast %cst_80 : f32 to vector<2x128xf32>
    %89 = arith.maximumf %87, %88 : vector<2x128xf32>
    %c0_81 = arith.constant 0 : index
    %c2_82 = arith.constant 2 : index
    %c0_83 = arith.constant 0 : index
    %c0_84 = arith.constant 0 : index
    %90 = vector.load %arg5[%c0_81, %c2_82, %c0_83, %c0_84] : memref<1x8x2x128xf32, #tpu.memory_space<vmem>>, vector<1x1x2x128xf32>
    %91 = vector.shape_cast %90 : vector<1x1x2x128xf32> to vector<2x128xf32>
    %92 = vector.shape_cast %89 : vector<2x128xf32> to vector<1x1x2x128xf32>
    tpu.vector_store %arg5[%c0_81, %c2_82, %c0_83, %c0_84], %92 {strides = array<i32>} : memref<1x8x2x128xf32, #tpu.memory_space<vmem>>, vector<1x1x2x128xf32>,
    %c0_85 = arith.constant 0 : index
    %c0_86 = arith.constant 0 : index
    %c0_87 = arith.constant 0 : index
    %c0_88 = arith.constant 0 : index
    %93 = vector.load %arg4[%c0_85, %c0_86, %c0_87, %c0_88] : memref<1x4x2x128xf32, #tpu.memory_space<vmem>>, vector<1x1x2x128xf32>
    %94 = vector.shape_cast %93 : vector<1x1x2x128xf32> to vector<2x128xf32>
    %c0_89 = arith.constant 0 : index
    %c3_90 = arith.constant 3 : index
    %95 = memref.load %arg2[%c0_89, %c3_90] : memref<4x8xf32, #tpu.memory_space<smem>>
    %96 = vector.broadcast %95 : f32 to vector<2x128xf32>
    %97 = arith.mulf %94, %96 : vector<2x128xf32>
    %c3_91 = arith.constant 3 : index
    %98 = memref.load %arg3[%c3_91] : memref<8xf32, #tpu.memory_space<smem>>
    %99 = vector.broadcast %98 : f32 to vector<2x128xf32>
    %100 = arith.addf %97, %99 : vector<2x128xf32>
    %c0_92 = arith.constant 0 : index
    %c1_93 = arith.constant 1 : index
    %c0_94 = arith.constant 0 : index
    %c0_95 = arith.constant 0 : index
    %101 = vector.load %arg4[%c0_92, %c1_93, %c0_94, %c0_95] : memref<1x4x2x128xf32, #tpu.memory_space<vmem>>, vector<1x1x2x128xf32>
    %102 = vector.shape_cast %101 : vector<1x1x2x128xf32> to vector<2x128xf32>
    %c1_96 = arith.constant 1 : index
    %c3_97 = arith.constant 3 : index
    %103 = memref.load %arg2[%c1_96, %c3_97] : memref<4x8xf32, #tpu.memory_space<smem>>
    %104 = vector.broadcast %103 : f32 to vector<2x128xf32>
    %105 = arith.mulf %102, %104 : vector<2x128xf32>
    %106 = arith.addf %100, %105 : vector<2x128xf32>
    %c0_98 = arith.constant 0 : index
    %c2_99 = arith.constant 2 : index
    %c0_100 = arith.constant 0 : index
    %c0_101 = arith.constant 0 : index
    %107 = vector.load %arg4[%c0_98, %c2_99, %c0_100, %c0_101] : memref<1x4x2x128xf32, #tpu.memory_space<vmem>>, vector<1x1x2x128xf32>
    %108 = vector.shape_cast %107 : vector<1x1x2x128xf32> to vector<2x128xf32>
    %c2_102 = arith.constant 2 : index
    %c3_103 = arith.constant 3 : index
    %109 = memref.load %arg2[%c2_102, %c3_103] : memref<4x8xf32, #tpu.memory_space<smem>>
    %110 = vector.broadcast %109 : f32 to vector<2x128xf32>
    %111 = arith.mulf %108, %110 : vector<2x128xf32>
    %112 = arith.addf %106, %111 : vector<2x128xf32>
    %c0_104 = arith.constant 0 : index
    %c3_105 = arith.constant 3 : index
    %c0_106 = arith.constant 0 : index
    %c0_107 = arith.constant 0 : index
    %113 = vector.load %arg4[%c0_104, %c3_105, %c0_106, %c0_107] : memref<1x4x2x128xf32, #tpu.memory_space<vmem>>, vector<1x1x2x128xf32>
    %114 = vector.shape_cast %113 : vector<1x1x2x128xf32> to vector<2x128xf32>
    %c3_108 = arith.constant 3 : index
    %c3_109 = arith.constant 3 : index
    %115 = memref.load %arg2[%c3_108, %c3_109] : memref<4x8xf32, #tpu.memory_space<smem>>
    %116 = vector.broadcast %115 : f32 to vector<2x128xf32>
    %117 = arith.mulf %114, %116 : vector<2x128xf32>
    %118 = arith.addf %112, %117 : vector<2x128xf32>
    %cst_110 = arith.constant 0.000000e+00 : f32
    %119 = vector.broadcast %cst_110 : f32 to vector<2x128xf32>
    %120 = arith.maximumf %118, %119 : vector<2x128xf32>
    %c0_111 = arith.constant 0 : index
    %c3_112 = arith.constant 3 : index
    %c0_113 = arith.constant 0 : index
    %c0_114 = arith.constant 0 : index
    %121 = vector.load %arg5[%c0_111, %c3_112, %c0_113, %c0_114] : memref<1x8x2x128xf32, #tpu.memory_space<vmem>>, vector<1x1x2x128xf32>
    %122 = vector.shape_cast %121 : vector<1x1x2x128xf32> to vector<2x128xf32>
    %123 = vector.shape_cast %120 : vector<2x128xf32> to vector<1x1x2x128xf32>
    tpu.vector_store %arg5[%c0_111, %c3_112, %c0_113, %c0_114], %123 {strides = array<i32>} : memref<1x8x2x128xf32, #tpu.memory_space<vmem>>, vector<1x1x2x128xf32>,
    %c0_115 = arith.constant 0 : index
    %c0_116 = arith.constant 0 : index
    %c0_117 = arith.constant 0 : index
    %c0_118 = arith.constant 0 : index
    %124 = vector.load %arg4[%c0_115, %c0_116, %c0_117, %c0_118] : memref<1x4x2x128xf32, #tpu.memory_space<vmem>>, vector<1x1x2x128xf32>
    %125 = vector.shape_cast %124 : vector<1x1x2x128xf32> to vector<2x128xf32>
    %c0_119 = arith.constant 0 : index
    %c4 = arith.constant 4 : index
    %126 = memref.load %arg2[%c0_119, %c4] : memref<4x8xf32, #tpu.memory_space<smem>>
    %127 = vector.broadcast %126 : f32 to vector<2x128xf32>
    %128 = arith.mulf %125, %127 : vector<2x128xf32>
    %c4_120 = arith.constant 4 : index
    %129 = memref.load %arg3[%c4_120] : memref<8xf32, #tpu.memory_space<smem>>
    %130 = vector.broadcast %129 : f32 to vector<2x128xf32>
    %131 = arith.addf %128, %130 : vector<2x128xf32>
    %c0_121 = arith.constant 0 : index
    %c1_122 = arith.constant 1 : index
    %c0_123 = arith.constant 0 : index
    %c0_124 = arith.constant 0 : index
    %132 = vector.load %arg4[%c0_121, %c1_122, %c0_123, %c0_124] : memref<1x4x2x128xf32, #tpu.memory_space<vmem>>, vector<1x1x2x128xf32>
    %133 = vector.shape_cast %132 : vector<1x1x2x128xf32> to vector<2x128xf32>
    %c1_125 = arith.constant 1 : index
    %c4_126 = arith.constant 4 : index
    %134 = memref.load %arg2[%c1_125, %c4_126] : memref<4x8xf32, #tpu.memory_space<smem>>
    %135 = vector.broadcast %134 : f32 to vector<2x128xf32>
    %136 = arith.mulf %133, %135 : vector<2x128xf32>
    %137 = arith.addf %131, %136 : vector<2x128xf32>
    %c0_127 = arith.constant 0 : index
    %c2_128 = arith.constant 2 : index
    %c0_129 = arith.constant 0 : index
    %c0_130 = arith.constant 0 : index
    %138 = vector.load %arg4[%c0_127, %c2_128, %c0_129, %c0_130] : memref<1x4x2x128xf32, #tpu.memory_space<vmem>>, vector<1x1x2x128xf32>
    %139 = vector.shape_cast %138 : vector<1x1x2x128xf32> to vector<2x128xf32>
    %c2_131 = arith.constant 2 : index
    %c4_132 = arith.constant 4 : index
    %140 = memref.load %arg2[%c2_131, %c4_132] : memref<4x8xf32, #tpu.memory_space<smem>>
    %141 = vector.broadcast %140 : f32 to vector<2x128xf32>
    %142 = arith.mulf %139, %141 : vector<2x128xf32>
    %143 = arith.addf %137, %142 : vector<2x128xf32>
    %c0_133 = arith.constant 0 : index
    %c3_134 = arith.constant 3 : index
    %c0_135 = arith.constant 0 : index
    %c0_136 = arith.constant 0 : index
    %144 = vector.load %arg4[%c0_133, %c3_134, %c0_135, %c0_136] : memref<1x4x2x128xf32, #tpu.memory_space<vmem>>, vector<1x1x2x128xf32>
    %145 = vector.shape_cast %144 : vector<1x1x2x128xf32> to vector<2x128xf32>
    %c3_137 = arith.constant 3 : index
    %c4_138 = arith.constant 4 : index
    %146 = memref.load %arg2[%c3_137, %c4_138] : memref<4x8xf32, #tpu.memory_space<smem>>
    %147 = vector.broadcast %146 : f32 to vector<2x128xf32>
    %148 = arith.mulf %145, %147 : vector<2x128xf32>
    %149 = arith.addf %143, %148 : vector<2x128xf32>
    %cst_139 = arith.constant 0.000000e+00 : f32
    %150 = vector.broadcast %cst_139 : f32 to vector<2x128xf32>
    %151 = arith.maximumf %149, %150 : vector<2x128xf32>
    %c0_140 = arith.constant 0 : index
    %c4_141 = arith.constant 4 : index
    %c0_142 = arith.constant 0 : index
    %c0_143 = arith.constant 0 : index
    %152 = vector.load %arg5[%c0_140, %c4_141, %c0_142, %c0_143] : memref<1x8x2x128xf32, #tpu.memory_space<vmem>>, vector<1x1x2x128xf32>
    %153 = vector.shape_cast %152 : vector<1x1x2x128xf32> to vector<2x128xf32>
    %154 = vector.shape_cast %151 : vector<2x128xf32> to vector<1x1x2x128xf32>
    tpu.vector_store %arg5[%c0_140, %c4_141, %c0_142, %c0_143], %154 {strides = array<i32>} : memref<1x8x2x128xf32, #tpu.memory_space<vmem>>, vector<1x1x2x128xf32>,
    %c0_144 = arith.constant 0 : index
    %c0_145 = arith.constant 0 : index
    %c0_146 = arith.constant 0 : index
    %c0_147 = arith.constant 0 : index
    %155 = vector.load %arg4[%c0_144, %c0_145, %c0_146, %c0_147] : memref<1x4x2x128xf32, #tpu.memory_space<vmem>>, vector<1x1x2x128xf32>
    %156 = vector.shape_cast %155 : vector<1x1x2x128xf32> to vector<2x128xf32>
    %c0_148 = arith.constant 0 : index
    %c5 = arith.constant 5 : index
    %157 = memref.load %arg2[%c0_148, %c5] : memref<4x8xf32, #tpu.memory_space<smem>>
    %158 = vector.broadcast %157 : f32 to vector<2x128xf32>
    %159 = arith.mulf %156, %158 : vector<2x128xf32>
    %c5_149 = arith.constant 5 : index
    %160 = memref.load %arg3[%c5_149] : memref<8xf32, #tpu.memory_space<smem>>
    %161 = vector.broadcast %160 : f32 to vector<2x128xf32>
    %162 = arith.addf %159, %161 : vector<2x128xf32>
    %c0_150 = arith.constant 0 : index
    %c1_151 = arith.constant 1 : index
    %c0_152 = arith.constant 0 : index
    %c0_153 = arith.constant 0 : index
    %163 = vector.load %arg4[%c0_150, %c1_151, %c0_152, %c0_153] : memref<1x4x2x128xf32, #tpu.memory_space<vmem>>, vector<1x1x2x128xf32>
    %164 = vector.shape_cast %163 : vector<1x1x2x128xf32> to vector<2x128xf32>
    %c1_154 = arith.constant 1 : index
    %c5_155 = arith.constant 5 : index
    %165 = memref.load %arg2[%c1_154, %c5_155] : memref<4x8xf32, #tpu.memory_space<smem>>
    %166 = vector.broadcast %165 : f32 to vector<2x128xf32>
    %167 = arith.mulf %164, %166 : vector<2x128xf32>
    %168 = arith.addf %162, %167 : vector<2x128xf32>
    %c0_156 = arith.constant 0 : index
    %c2_157 = arith.constant 2 : index
    %c0_158 = arith.constant 0 : index
    %c0_159 = arith.constant 0 : index
    %169 = vector.load %arg4[%c0_156, %c2_157, %c0_158, %c0_159] : memref<1x4x2x128xf32, #tpu.memory_space<vmem>>, vector<1x1x2x128xf32>
    %170 = vector.shape_cast %169 : vector<1x1x2x128xf32> to vector<2x128xf32>
    %c2_160 = arith.constant 2 : index
    %c5_161 = arith.constant 5 : index
    %171 = memref.load %arg2[%c2_160, %c5_161] : memref<4x8xf32, #tpu.memory_space<smem>>
    %172 = vector.broadcast %171 : f32 to vector<2x128xf32>
    %173 = arith.mulf %170, %172 : vector<2x128xf32>
    %174 = arith.addf %168, %173 : vector<2x128xf32>
    %c0_162 = arith.constant 0 : index
    %c3_163 = arith.constant 3 : index
    %c0_164 = arith.constant 0 : index
    %c0_165 = arith.constant 0 : index
    %175 = vector.load %arg4[%c0_162, %c3_163, %c0_164, %c0_165] : memref<1x4x2x128xf32, #tpu.memory_space<vmem>>, vector<1x1x2x128xf32>
    %176 = vector.shape_cast %175 : vector<1x1x2x128xf32> to vector<2x128xf32>
    %c3_166 = arith.constant 3 : index
    %c5_167 = arith.constant 5 : index
    %177 = memref.load %arg2[%c3_166, %c5_167] : memref<4x8xf32, #tpu.memory_space<smem>>
    %178 = vector.broadcast %177 : f32 to vector<2x128xf32>
    %179 = arith.mulf %176, %178 : vector<2x128xf32>
    %180 = arith.addf %174, %179 : vector<2x128xf32>
    %cst_168 = arith.constant 0.000000e+00 : f32
    %181 = vector.broadcast %cst_168 : f32 to vector<2x128xf32>
    %182 = arith.maximumf %180, %181 : vector<2x128xf32>
    %c0_169 = arith.constant 0 : index
    %c5_170 = arith.constant 5 : index
    %c0_171 = arith.constant 0 : index
    %c0_172 = arith.constant 0 : index
    %183 = vector.load %arg5[%c0_169, %c5_170, %c0_171, %c0_172] : memref<1x8x2x128xf32, #tpu.memory_space<vmem>>, vector<1x1x2x128xf32>
    %184 = vector.shape_cast %183 : vector<1x1x2x128xf32> to vector<2x128xf32>
    %185 = vector.shape_cast %182 : vector<2x128xf32> to vector<1x1x2x128xf32>
    tpu.vector_store %arg5[%c0_169, %c5_170, %c0_171, %c0_172], %185 {strides = array<i32>} : memref<1x8x2x128xf32, #tpu.memory_space<vmem>>, vector<1x1x2x128xf32>,
    %c0_173 = arith.constant 0 : index
    %c0_174 = arith.constant 0 : index
    %c0_175 = arith.constant 0 : index
    %c0_176 = arith.constant 0 : index
    %186 = vector.load %arg4[%c0_173, %c0_174, %c0_175, %c0_176] : memref<1x4x2x128xf32, #tpu.memory_space<vmem>>, vector<1x1x2x128xf32>
    %187 = vector.shape_cast %186 : vector<1x1x2x128xf32> to vector<2x128xf32>
    %c0_177 = arith.constant 0 : index
    %c6 = arith.constant 6 : index
    %188 = memref.load %arg2[%c0_177, %c6] : memref<4x8xf32, #tpu.memory_space<smem>>
    %189 = vector.broadcast %188 : f32 to vector<2x128xf32>
    %190 = arith.mulf %187, %189 : vector<2x128xf32>
    %c6_178 = arith.constant 6 : index
    %191 = memref.load %arg3[%c6_178] : memref<8xf32, #tpu.memory_space<smem>>
    %192 = vector.broadcast %191 : f32 to vector<2x128xf32>
    %193 = arith.addf %190, %192 : vector<2x128xf32>
    %c0_179 = arith.constant 0 : index
    %c1_180 = arith.constant 1 : index
    %c0_181 = arith.constant 0 : index
    %c0_182 = arith.constant 0 : index
    %194 = vector.load %arg4[%c0_179, %c1_180, %c0_181, %c0_182] : memref<1x4x2x128xf32, #tpu.memory_space<vmem>>, vector<1x1x2x128xf32>
    %195 = vector.shape_cast %194 : vector<1x1x2x128xf32> to vector<2x128xf32>
    %c1_183 = arith.constant 1 : index
    %c6_184 = arith.constant 6 : index
    %196 = memref.load %arg2[%c1_183, %c6_184] : memref<4x8xf32, #tpu.memory_space<smem>>
    %197 = vector.broadcast %196 : f32 to vector<2x128xf32>
    %198 = arith.mulf %195, %197 : vector<2x128xf32>
    %199 = arith.addf %193, %198 : vector<2x128xf32>
    %c0_185 = arith.constant 0 : index
    %c2_186 = arith.constant 2 : index
    %c0_187 = arith.constant 0 : index
    %c0_188 = arith.constant 0 : index
    %200 = vector.load %arg4[%c0_185, %c2_186, %c0_187, %c0_188] : memref<1x4x2x128xf32, #tpu.memory_space<vmem>>, vector<1x1x2x128xf32>
    %201 = vector.shape_cast %200 : vector<1x1x2x128xf32> to vector<2x128xf32>
    %c2_189 = arith.constant 2 : index
    %c6_190 = arith.constant 6 : index
    %202 = memref.load %arg2[%c2_189, %c6_190] : memref<4x8xf32, #tpu.memory_space<smem>>
    %203 = vector.broadcast %202 : f32 to vector<2x128xf32>
    %204 = arith.mulf %201, %203 : vector<2x128xf32>
    %205 = arith.addf %199, %204 : vector<2x128xf32>
    %c0_191 = arith.constant 0 : index
    %c3_192 = arith.constant 3 : index
    %c0_193 = arith.constant 0 : index
    %c0_194 = arith.constant 0 : index
    %206 = vector.load %arg4[%c0_191, %c3_192, %c0_193, %c0_194] : memref<1x4x2x128xf32, #tpu.memory_space<vmem>>, vector<1x1x2x128xf32>
    %207 = vector.shape_cast %206 : vector<1x1x2x128xf32> to vector<2x128xf32>
    %c3_195 = arith.constant 3 : index
    %c6_196 = arith.constant 6 : index
    %208 = memref.load %arg2[%c3_195, %c6_196] : memref<4x8xf32, #tpu.memory_space<smem>>
    %209 = vector.broadcast %208 : f32 to vector<2x128xf32>
    %210 = arith.mulf %207, %209 : vector<2x128xf32>
    %211 = arith.addf %205, %210 : vector<2x128xf32>
    %cst_197 = arith.constant 0.000000e+00 : f32
    %212 = vector.broadcast %cst_197 : f32 to vector<2x128xf32>
    %213 = arith.maximumf %211, %212 : vector<2x128xf32>
    %c0_198 = arith.constant 0 : index
    %c6_199 = arith.constant 6 : index
    %c0_200 = arith.constant 0 : index
    %c0_201 = arith.constant 0 : index
    %214 = vector.load %arg5[%c0_198, %c6_199, %c0_200, %c0_201] : memref<1x8x2x128xf32, #tpu.memory_space<vmem>>, vector<1x1x2x128xf32>
    %215 = vector.shape_cast %214 : vector<1x1x2x128xf32> to vector<2x128xf32>
    %216 = vector.shape_cast %213 : vector<2x128xf32> to vector<1x1x2x128xf32>
    tpu.vector_store %arg5[%c0_198, %c6_199, %c0_200, %c0_201], %216 {strides = array<i32>} : memref<1x8x2x128xf32, #tpu.memory_space<vmem>>, vector<1x1x2x128xf32>,
    %c0_202 = arith.constant 0 : index
    %c0_203 = arith.constant 0 : index
    %c0_204 = arith.constant 0 : index
    %c0_205 = arith.constant 0 : index
    %217 = vector.load %arg4[%c0_202, %c0_203, %c0_204, %c0_205] : memref<1x4x2x128xf32, #tpu.memory_space<vmem>>, vector<1x1x2x128xf32>
    %218 = vector.shape_cast %217 : vector<1x1x2x128xf32> to vector<2x128xf32>
    %c0_206 = arith.constant 0 : index
    %c7 = arith.constant 7 : index
    %219 = memref.load %arg2[%c0_206, %c7] : memref<4x8xf32, #tpu.memory_space<smem>>
    %220 = vector.broadcast %219 : f32 to vector<2x128xf32>
    %221 = arith.mulf %218, %220 : vector<2x128xf32>
    %c7_207 = arith.constant 7 : index
    %222 = memref.load %arg3[%c7_207] : memref<8xf32, #tpu.memory_space<smem>>
    %223 = vector.broadcast %222 : f32 to vector<2x128xf32>
    %224 = arith.addf %221, %223 : vector<2x128xf32>
    %c0_208 = arith.constant 0 : index
    %c1_209 = arith.constant 1 : index
    %c0_210 = arith.constant 0 : index
    %c0_211 = arith.constant 0 : index
    %225 = vector.load %arg4[%c0_208, %c1_209, %c0_210, %c0_211] : memref<1x4x2x128xf32, #tpu.memory_space<vmem>>, vector<1x1x2x128xf32>
    %226 = vector.shape_cast %225 : vector<1x1x2x128xf32> to vector<2x128xf32>
    %c1_212 = arith.constant 1 : index
    %c7_213 = arith.constant 7 : index
    %227 = memref.load %arg2[%c1_212, %c7_213] : memref<4x8xf32, #tpu.memory_space<smem>>
    %228 = vector.broadcast %227 : f32 to vector<2x128xf32>
    %229 = arith.mulf %226, %228 : vector<2x128xf32>
    %230 = arith.addf %224, %229 : vector<2x128xf32>
    %c0_214 = arith.constant 0 : index
    %c2_215 = arith.constant 2 : index
    %c0_216 = arith.constant 0 : index
    %c0_217 = arith.constant 0 : index
    %231 = vector.load %arg4[%c0_214, %c2_215, %c0_216, %c0_217] : memref<1x4x2x128xf32, #tpu.memory_space<vmem>>, vector<1x1x2x128xf32>
    %232 = vector.shape_cast %231 : vector<1x1x2x128xf32> to vector<2x128xf32>
    %c2_218 = arith.constant 2 : index
    %c7_219 = arith.constant 7 : index
    %233 = memref.load %arg2[%c2_218, %c7_219] : memref<4x8xf32, #tpu.memory_space<smem>>
    %234 = vector.broadcast %233 : f32 to vector<2x128xf32>
    %235 = arith.mulf %232, %234 : vector<2x128xf32>
    %236 = arith.addf %230, %235 : vector<2x128xf32>
    %c0_220 = arith.constant 0 : index
    %c3_221 = arith.constant 3 : index
    %c0_222 = arith.constant 0 : index
    %c0_223 = arith.constant 0 : index
    %237 = vector.load %arg4[%c0_220, %c3_221, %c0_222, %c0_223] : memref<1x4x2x128xf32, #tpu.memory_space<vmem>>, vector<1x1x2x128xf32>
    %238 = vector.shape_cast %237 : vector<1x1x2x128xf32> to vector<2x128xf32>
    %c3_224 = arith.constant 3 : index
    %c7_225 = arith.constant 7 : index
    %239 = memref.load %arg2[%c3_224, %c7_225] : memref<4x8xf32, #tpu.memory_space<smem>>
    %240 = vector.broadcast %239 : f32 to vector<2x128xf32>
    %241 = arith.mulf %238, %240 : vector<2x128xf32>
    %242 = arith.addf %236, %241 : vector<2x128xf32>
    %cst_226 = arith.constant 0.000000e+00 : f32
    %243 = vector.broadcast %cst_226 : f32 to vector<2x128xf32>
    %244 = arith.maximumf %242, %243 : vector<2x128xf32>
    %c0_227 = arith.constant 0 : index
    %c7_228 = arith.constant 7 : index
    %c0_229 = arith.constant 0 : index
    %c0_230 = arith.constant 0 : index
    %245 = vector.load %arg5[%c0_227, %c7_228, %c0_229, %c0_230] : memref<1x8x2x128xf32, #tpu.memory_space<vmem>>, vector<1x1x2x128xf32>
    %246 = vector.shape_cast %245 : vector<1x1x2x128xf32> to vector<2x128xf32>
    %247 = vector.shape_cast %244 : vector<2x128xf32> to vector<1x1x2x128xf32>
    tpu.vector_store %arg5[%c0_227, %c7_228, %c0_229, %c0_230], %247 {strides = array<i32>} : memref<1x8x2x128xf32, #tpu.memory_space<vmem>>, vector<1x1x2x128xf32>,
    return
  }
  func.func @transform_0(%arg0: i32, %arg1: i32) -> (i32, i32) {
    %c0_i32 = arith.constant 0 : i32
    %c0_i32_0 = arith.constant 0 : i32
    %c0_i32_1 = arith.constant 0 : i32
    return %c0_i32, %c0_i32_0 : i32, i32
  }
  func.func @transform_1(%arg0: i32, %arg1: i32) -> i32 {
    %c0_i32 = arith.constant 0 : i32
    %c0_i32_0 = arith.constant 0 : i32
    return %c0_i32 : i32
  }
  func.func @transform_2(%arg0: i32, %arg1: i32) -> (i32, i32, i32, i32) {
    %c0_i32 = arith.constant 0 : i32
    %c0_i32_0 = arith.constant 0 : i32
    %c0_i32_1 = arith.constant 0 : i32
    return %arg0, %c0_i32, %arg1, %c0_i32_0 : i32, i32, i32, i32
  }
  func.func @transform_3(%arg0: i32, %arg1: i32) -> (i32, i32, i32, i32) {
    %c0_i32 = arith.constant 0 : i32
    %c0_i32_0 = arith.constant 0 : i32
    %c0_i32_1 = arith.constant 0 : i32
    return %arg0, %c0_i32, %arg1, %c0_i32_0 : i32, i32, i32, i32
  }
}

</mosaic_0001>

<llo_original>
// kernel: tpu_custom_call.1
$region0: #{tpu_custom_call.1}
  #allocation0 [shape = 'u32[]', space=smem, size = 0x4, offset = 0x4, fixed_abs, tag = 'smem constant byte address 0x4 - core index']
  #allocation1 [shape = 'u32[144,128]{1,0:T(1,128)}', space=vmem, size = 0x12000, scoped, tag = 'internal scratch']
  %s0 = inlined_call_operand.hbm [shape: f32[4,8], index: 0, kind: input, shape index: {}]
  %s1 = inlined_call_operand.vmem [shape: f32[8], index: 1, kind: input, shape index: {}]
  %s2 = inlined_call_operand.hbm [shape: f32[2,4,2,128], index: 2, kind: input, shape index: {}]
  %s3 = inlined_call_operand.hbm [shape: f32[2,8,2,128], index: 3, kind: output, shape index: {}]
  %s4 = sld [smem:[#allocation0]]
  $region57: #{tpu_custom_call.1} parent=0
    _
  %s6 = ssub.s32 1, %s4
  %s7 = scalar_select 0, %s6, %s4
  $region1: #{tpu_custom_call.1} parent=0
    #allocation2 [shape = 'u8[2048]{0}', space=smem, size = 0x800, scoped, tag = 'input window, operand 0, single buffered']
    #allocation3 [shape = 's32[2]{0}', space=sflag, size = 0x8, scoped, tag = 'scoped memory for tpu_custom_call.1']
    #allocation4 [shape = 's32[2]{0}', space=sflag, size = 0x8, scoped, tag = 'scoped memory for tpu_custom_call.1']
    #allocation5 [shape = 's32[2]{0}', space=sflag, size = 0x8, scoped, tag = 'scoped memory for tpu_custom_call.1']
    #allocation6 [shape = 's32[2]{0}', space=sflag, size = 0x8, scoped, tag = 'scoped memory for tpu_custom_call.1']
    #allocation7 [shape = 'u8[512]{0}', space=smem, size = 0x200, scoped, tag = 'input window, operand 1, single buffered']
    #allocation8 [shape = 'u8[8192]{0}', space=vmem, size = 0x2000, scoped, tag = 'input window, operand 2']
    #allocation9 [shape = 'u8[16384]{0}', space=vmem, size = 0x4000, scoped, tag = 'output window, operand 0']
    %8 = vsyncpa [#allocation5], 0
    %9 = vsyncpa [#allocation6], 0
    %10 = vsyncpa [#allocation3], 0
    %s11 = scalar_lea.sflag [#allocation3], 1
    %12 = vsyncpa %s11, 0
    %13 = vsyncpa [#allocation4], 0
    %s14 = scalar_lea.sflag [#allocation4], 1
    %15 = vsyncpa %s14, 0
    loop: start=0, step=1, limit=4
    $region2: #{tpu_custom_call.1} parent=1 // loop_pre_header
      _
    $region3: #{tpu_custom_call.1} parent=1 // loop_header
      %s17 = sphi 0, %s21
      %p18 = scmp.ge.s32.totalorder %s17, 4
      %s24 = sphi 0, %s36
      %s25 = sphi 0, %s32
      %s26 = sphi 0, %s24
      %s27 = sphi 0, %s25
      %s28 = sphi 0, %s26
      %s29 = sphi 0, %s27
      %s37 = sphi 0, %s37
      %s39 = sphi 0, %s37
      %s40 = sphi 0, %s39
      %s54 = sphi 0, %s40
      %s58 = sphi 0, %s58
      %s60 = sphi 0, %s58
      %s61 = sphi 0, %s60
      %s75 = sphi 0, %s61
      %s83 = sphi 0, %s85
      %s86 = sphi 0, %s83
      %s87 = sphi 0, %s86
      %s103 = sphi 0, %s87
      %s111 = sphi 0, %s113
      %s114 = sphi 0, %s111
      %s115 = sphi 0, %s114
      %s131 = sphi 0, %s115
    $region4: #{tpu_custom_call.1} parent=1 // loop_header_branch
      %20 = sbr.rel (%p18) target = $region8
    $region5: #{tpu_custom_call.1} parent=1 // loop_body
      %s22 = ssub.s32 %s17, 1
      %s23 = ssub.s32 %s17, 2
      %s30 = sadd.s32 1, %s25
      %p31 = scmp.ge.s32.totalorder %s30, 1
      %s32 = scalar_select %p31, 0, %s30
      %s33 = sadd.s32 1, %s24
      %s34 = scalar_select %p31, %s33, %s24
      %p35 = scmp.ge.s32.totalorder %s34, 2
      %s36 = scalar_select %p35, 0, %s34
      %s38 = sadd.s32 %s37, 1
      %p41 = scmp.eq.s32.totalorder %s17, 1
      %p42 = scmp.ne.s32.totalorder %s37, %s39
      %p43 = scmp.eq.s32.totalorder %s17, 0
      %p44 = por %p42, %p43
      %p45 = scmp.ne.s32.totalorder %s37, %s39
      %p46 = scmp.eq.s32.totalorder %s22, 1
      %p47 = por %p45, %p46
      %p48 = scmp.ne.s32.totalorder %s39, %s40
      %p49 = scmp.eq.s32.totalorder %s22, 0
      %p50 = por %p48, %p49
      %p51 = scmp.ne.s32.totalorder %s39, %s40
      %p52 = scmp.eq.s32.totalorder %s23, 1
      %p53 = por %p51, %p52
      %p55 = scmp.ne.s32.totalorder %s40, %s54
      %p56 = scmp.eq.s32.totalorder %s23, 0
      %p57 = por %p55, %p56
      %s59 = sadd.s32 %s58, 1
      %p62 = scmp.eq.s32.totalorder %s17, 1
      %p63 = scmp.ne.s32.totalorder %s58, %s60
      %p64 = scmp.eq.s32.totalorder %s17, 0
      %p65 = por %p63, %p64
      %p66 = scmp.ne.s32.totalorder %s58, %s60
      %p67 = scmp.eq.s32.totalorder %s22, 1
      %p68 = por %p66, %p67
      %p69 = scmp.ne.s32.totalorder %s60, %s61
      %p70 = scmp.eq.s32.totalorder %s22, 0
      %p71 = por %p69, %p70
      %p72 = scmp.ne.s32.totalorder %s60, %s61
      %p73 = scmp.eq.s32.totalorder %s23, 1
      %p74 = por %p72, %p73
      %p76 = scmp.ne.s32.totalorder %s61, %s75
      %p77 = scmp.eq.s32.totalorder %s23, 0
      %p78 = por %p76, %p77
      %s79 = ssub.s32 %s24, %s36
      %s80 = ssub.s32 %s25, %s32
      %s81 = sor.u32 %s79, %s80
      %p82 = scmp.eq.s32.totalorder %s81, 0
      %s84 = sadd.s32 %s83, 1
      %s85 = scalar_select %p82, %s83, %s84
      %p88 = pneg %p82
      %p89 = scmp.eq.s32.totalorder %s17, 1
      %p90 = por %p88, %p89
      %p91 = scmp.ne.s32.totalorder %s83, %s86
      %p92 = scmp.eq.s32.totalorder %s17, 0
      %p93 = por %p91, %p92
      %p94 = scmp.ne.s32.totalorder %s83, %s86
      %p95 = scmp.eq.s32.totalorder %s22, 1
      %p96 = por %p94, %p95
      %p97 = scmp.ne.s32.totalorder %s86, %s87
      %p98 = scmp.eq.s32.totalorder %s22, 0
      %p99 = por %p97, %p98
      %p100 = scmp.ne.s32.totalorder %s86, %s87
      %p101 = scmp.eq.s32.totalorder %s23, 1
      %p102 = por %p100, %p101
      %p104 = scmp.ne.s32.totalorder %s87, %s103
      %p105 = scmp.eq.s32.totalorder %s23, 0
      %p106 = por %p104, %p105
      %s107 = ssub.s32 %s24, %s36
      %s108 = ssub.s32 %s25, %s32
      %s109 = sor.u32 %s107, %s108
      %p110 = scmp.eq.s32.totalorder %s109, 0
      %s112 = sadd.s32 %s111, 1
      %s113 = scalar_select %p110, %s111, %s112
      %p116 = pneg %p110
      %p117 = scmp.eq.s32.totalorder %s17, 1
      %p118 = por %p116, %p117
      %p119 = scmp.ne.s32.totalorder %s111, %s114
      %p120 = scmp.eq.s32.totalorder %s17, 0
      %p121 = por %p119, %p120
      %p122 = scmp.ne.s32.totalorder %s111, %s114
      %p123 = scmp.eq.s32.totalorder %s22, 1
      %p124 = por %p122, %p123
      %p125 = scmp.ne.s32.totalorder %s114, %s115
      %p126 = scmp.eq.s32.totalorder %s22, 0
      %p127 = por %p125, %p126
      %p128 = scmp.ne.s32.totalorder %s114, %s115
      %p129 = scmp.eq.s32.totalorder %s23, 1
      %p130 = por %p128, %p129
      %p132 = scmp.ne.s32.totalorder %s115, %s131
      %p133 = scmp.eq.s32.totalorder %s23, 0
      %p134 = por %p132, %p133
      %p135 = scmp.le.s32.totalorder 1, %s17
      %p136 = scmp.lt.s32.totalorder %s17, 3
      %p137 = pnand %p135, %p136
      %p138 = pneg %p137
      // Predicated region
      $region9: #{tpu_custom_call.1} parent=5 // pred_check
        _
      $region10: #{tpu_custom_call.1} parent=5 // pred_check_branch
        %140 = sbr.rel (%p137) target = $region12
      $region11: #{tpu_custom_call.1} parent=5 // pred_region
        %s141 = ssub.s32 %s17, 1
        // Predicated region
        $region13: #{tpu_custom_call.1} parent=11 // pred_check
          %p142 = pneg %p50
        $region14: #{tpu_custom_call.1} parent=11 // pred_check_branch
          %144 = sbr.rel (%p142) target = $region16
        $region15: #{tpu_custom_call.1} parent=11 // pred_region
          %s146 = ssub.s32 64, 64
          %147 = vsyncadd [#allocation5], %s146
          %150 = dma.hbm_to_smem %s0, 64, [#allocation2], [#allocation5]
        $region16: #{tpu_custom_call.1} parent=11 // pred_fallthru
          _
        // Predicated region
        $region17: #{tpu_custom_call.1} parent=11 // pred_check
          %p151 = pneg %p71
        $region18: #{tpu_custom_call.1} parent=11 // pred_check_branch
          %153 = sbr.rel (%p151) target = $region20
        $region19: #{tpu_custom_call.1} parent=11 // pred_region
          %s155 = ssub.s32 16, 16
          %156 = vsyncadd [#allocation6], %s155
          %s158 = sshll.u32 %s1, 4
          %s159 = int_to_ptr.vmem [resolvable:$true] %s158
          %161 = dma.vmem_to_smem %s159, 16, [#allocation7], [#allocation6]
        $region20: #{tpu_custom_call.1} parent=11 // pred_fallthru
          _
      $region12: #{tpu_custom_call.1} parent=5 // pred_fallthru
        _
      %p162 = scmp.lt.s32.totalorder %s17, 2
      // Predicated region
      $region21: #{tpu_custom_call.1} parent=5 // pred_check
        %p163 = pneg %p162
      $region22: #{tpu_custom_call.1} parent=5 // pred_check_branch
        %165 = sbr.rel (%p163) target = $region24
      $region23: #{tpu_custom_call.1} parent=5 // pred_region
        // Predicated region
        $region25: #{tpu_custom_call.1} parent=23 // pred_check
          %p166 = pneg %p93
        $region26: #{tpu_custom_call.1} parent=23 // pred_check_branch
          %168 = sbr.rel (%p166) target = $region28
        $region27: #{tpu_custom_call.1} parent=23 // pred_region
          %s169 = sand.u32 %s83, 1
          %s170 = scalar_lea.sflag [#allocation3], %s169
          %s171 = sand.u32 %s83, 1
          %s172 = smul.addr %s171, 8
          %s173 = scalar_lea.vmem [#allocation8], %s172
          %s175 = ssub.s32 128, 128
          %176 = vsyncadd %s170, %s175
          %s177 = smul.addr %s24, 4
          %s178 = sadd.s32 %s25, %s177
          %s179 = smul.addr %s178, 32
          %s180 = scalar_lea.hbm %s2, %s179
          %s181 = sshll.u32 %s173, 4
          %s182 = int_to_ptr.vmem [resolvable:$true] %s181
          %187 = dma.hbm_to_vmem [thread:$0]  %s180, 128, %s182, %s170, 32, 32, 2
        $region28: #{tpu_custom_call.1} parent=23 // pred_fallthru
          _
      $region24: #{tpu_custom_call.1} parent=5 // pred_fallthru
        _
      %p188 = scmp.le.s32.totalorder 1, %s17
      %p189 = scmp.lt.s32.totalorder %s17, 3
      %p190 = pnand %p188, %p189
      %p191 = pneg %p190
      // Predicated region
      $region29: #{tpu_custom_call.1} parent=5 // pred_check
        _
      $region30: #{tpu_custom_call.1} parent=5 // pred_check_branch
        %193 = sbr.rel (%p190) target = $region32
      $region31: #{tpu_custom_call.1} parent=5 // pred_region
        %s194 = ssub.s32 %s17, 1
        // Predicated region
        $region33: #{tpu_custom_call.1} parent=31 // pred_check
          %p195 = pneg %p50
        $region34: #{tpu_custom_call.1} parent=31 // pred_check_branch
          %197 = sbr.rel (%p195) target = $region36
        $region35: #{tpu_custom_call.1} parent=31 // pred_region
          %198 = dma.done [#allocation5], 64
        $region36: #{tpu_custom_call.1} parent=31 // pred_fallthru
          _
        // Predicated region
        $region37: #{tpu_custom_call.1} parent=31 // pred_check
          %p199 = pneg %p71
        $region38: #{tpu_custom_call.1} parent=31 // pred_check_branch
          %201 = sbr.rel (%p199) target = $region40
        $region39: #{tpu_custom_call.1} parent=31 // pred_region
          %202 = dma.done [#allocation6], 16
        $region40: #{tpu_custom_call.1} parent=31 // pred_fallthru
          _
        %s203 = sand.u32 %s86, 1
        %s204 = scalar_lea.sflag [#allocation3], %s203
        %s205 = sand.u32 %s86, 1
        %s206 = smul.addr %s205, 8
        %s207 = scalar_lea.vmem [#allocation8], %s206
        // Predicated region
        $region41: #{tpu_custom_call.1} parent=31 // pred_check
          %p208 = pneg %p99
        $region42: #{tpu_custom_call.1} parent=31 // pred_check_branch
          %210 = sbr.rel (%p208) target = $region44
        $region43: #{tpu_custom_call.1} parent=31 // pred_region
          %211 = dma.done %s204, 128
        $region44: #{tpu_custom_call.1} parent=31 // pred_fallthru
          _
        %212 = sfence
        %p213 = pneg %p50
        %p214 = pneg %p47
        %p215 = pneg %p71
        %p216 = pneg %p68
        %s217 = sand.u32 %s86, 1
        %s218 = scalar_lea.sflag [#allocation3], %s217
        %s219 = sand.u32 %s86, 1
        %s220 = smul.addr %s219, 8
        %s221 = scalar_lea.vmem [#allocation8], %s220
        %p222 = pneg %p99
        %p223 = pneg %p96
        %p224 = pneg %p127
        %p225 = pneg %p124
        %s226 = sand.u32 %s114, 1
        %s227 = scalar_lea.sflag [#allocation4], %s226
        %s228 = sand.u32 %s114, 1
        %s229 = smul.addr %s228, 16
        %s230 = scalar_lea.vmem [#allocation9], %s229
        %v231 = vld [vmem:[%s207] sm:$0x3]
        %s232 = sld [smem:[#allocation2]]
        %v233 = vstv %s232
        %v234 = vmul.f32 %v231, %v233
        %s235 = sld [smem:[#allocation7]]
        %v236 = vstv %s235
        %v237 = vadd.f32 %v234, %v236
        %s238 = scalar_lea.vmem %s207, 2 [#allocation8]
        %v239 = vld [vmem:[%s238] sm:$0x3]
        %s240 = sld [smem:[#allocation2 + $0x80]]
        %v241 = vstv %s240
        %v242 = vmul.f32 %v239, %v241
        %v243 = vadd.f32 %v237, %v242
        %s244 = scalar_lea.vmem %s207, 4 [#allocation8]
        %v245 = vld [vmem:[%s244] sm:$0x3]
        %s246 = sld [smem:[#allocation2 + $0x100]]
        %v247 = vstv %s246
        %v248 = vmul.f32 %v245, %v247
        %v249 = vadd.f32 %v243, %v248
        %s250 = scalar_lea.vmem %s207, 6 [#allocation8]
        %v251 = vld [vmem:[%s250] sm:$0x3]
        %s252 = sld [smem:[#allocation2 + $0x180]]
        %v253 = vstv %s252
        %v254 = vmul.f32 %v251, %v253
        %v255 = vadd.f32 %v249, %v254
        %v256 = vmax.f32 %v255, 0.0
        %257 = vst [vmem:[%s230] sm:$0x3] %v256
        %v258 = vld [vmem:[%s207] sm:$0x3]
        %s259 = sld [smem:[#allocation2 + $0x1]]
        %v260 = vstv %s259
        %v261 = vmul.f32 %v258, %v260
        %s262 = sld [smem:[#allocation7 + $0x1]]
        %v263 = vstv %s262
        %v264 = vadd.f32 %v261, %v263
        %v265 = vld [vmem:[%s238] sm:$0x3]
        %s266 = sld [smem:[#allocation2 + $0x81]]
        %v267 = vstv %s266
        %v268 = vmul.f32 %v265, %v267
        %v269 = vadd.f32 %v264, %v268
        %v270 = vld [vmem:[%s244] sm:$0x3]
        %s271 = sld [smem:[#allocation2 + $0x101]]
        %v272 = vstv %s271
        %v273 = vmul.f32 %v270, %v272
        %v274 = vadd.f32 %v269, %v273
        %v275 = vld [vmem:[%s250] sm:$0x3]
        %s276 = sld [smem:[#allocation2 + $0x181]]
        %v277 = vstv %s276
        %v278 = vmul.f32 %v275, %v277
        %v279 = vadd.f32 %v274, %v278
        %v280 = vmax.f32 %v279, 0.0
        %s281 = scalar_lea.vmem %s230, 2 [#allocation9]
        %282 = vst [vmem:[%s281] sm:$0x3] %v280
        %v283 = vld [vmem:[%s207] sm:$0x3]
        %s284 = sld [smem:[#allocation2 + $0x2]]
        %v285 = vstv %s284
        %v286 = vmul.f32 %v283, %v285
        %s287 = sld [smem:[#allocation7 + $0x2]]
        %v288 = vstv %s287
        %v289 = vadd.f32 %v286, %v288
        %v290 = vld [vmem:[%s238] sm:$0x3]
        %s291 = sld [smem:[#allocation2 + $0x82]]
        %v292 = vstv %s291
        %v293 = vmul.f32 %v290, %v292
        %v294 = vadd.f32 %v289, %v293
        %v295 = vld [vmem:[%s244] sm:$0x3]
        %s296 = sld [smem:[#allocation2 + $0x102]]
        %v297 = vstv %s296
        %v298 = vmul.f32 %v295, %v297
        %v299 = vadd.f32 %v294, %v298
        %v300 = vld [vmem:[%s250] sm:$0x3]
        %s301 = sld [smem:[#allocation2 + $0x182]]
        %v302 = vstv %s301
        %v303 = vmul.f32 %v300, %v302
        %v304 = vadd.f32 %v299, %v303
        %v305 = vmax.f32 %v304, 0.0
        %s306 = scalar_lea.vmem %s230, 4 [#allocation9]
        %307 = vst [vmem:[%s306] sm:$0x3] %v305
        %v308 = vld [vmem:[%s207] sm:$0x3]
        %s309 = sld [smem:[#allocation2 + $0x3]]
        %v310 = vstv %s309
        %v311 = vmul.f32 %v308, %v310
        %s312 = sld [smem:[#allocation7 + $0x3]]
        %v313 = vstv %s312
        %v314 = vadd.f32 %v311, %v313
        %v315 = vld [vmem:[%s238] sm:$0x3]
        %s316 = sld [smem:[#allocation2 + $0x83]]
        %v317 = vstv %s316
        %v318 = vmul.f32 %v315, %v317
        %v319 = vadd.f32 %v314, %v318
        %v320 = vld [vmem:[%s244] sm:$0x3]
        %s321 = sld [smem:[#allocation2 + $0x103]]
        %v322 = vstv %s321
        %v323 = vmul.f32 %v320, %v322
        %v324 = vadd.f32 %v319, %v323
        %v325 = vld [vmem:[%s250] sm:$0x3]
        %s326 = sld [smem:[#allocation2 + $0x183]]
        %v327 = vstv %s326
        %v328 = vmul.f32 %v325, %v327
        %v329 = vadd.f32 %v324, %v328
        %v330 = vmax.f32 %v329, 0.0
        %s331 = scalar_lea.vmem %s230, 6 [#allocation9]
        %332 = vst [vmem:[%s331] sm:$0x3] %v330
        %v333 = vld [vmem:[%s207] sm:$0x3]
        %s334 = sld [smem:[#allocation2 + $0x4]]
        %v335 = vstv %s334
        %v336 = vmul.f32 %v333, %v335
        %s337 = sld [smem:[#allocation7 + $0x4]]
        %v338 = vstv %s337
        %v339 = vadd.f32 %v336, %v338
        %v340 = vld [vmem:[%s238] sm:$0x3]
        %s341 = sld [smem:[#allocation2 + $0x84]]
        %v342 = vstv %s341
        %v343 = vmul.f32 %v340, %v342
        %v344 = vadd.f32 %v339, %v343
        %v345 = vld [vmem:[%s244] sm:$0x3]
        %s346 = sld [smem:[#allocation2 + $0x104]]
        %v347 = vstv %s346
        %v348 = vmul.f32 %v345, %v347
        %v349 = vadd.f32 %v344, %v348
        %v350 = vld [vmem:[%s250] sm:$0x3]
        %s351 = sld [smem:[#allocation2 + $0x184]]
        %v352 = vstv %s351
        %v353 = vmul.f32 %v350, %v352
        %v354 = vadd.f32 %v349, %v353
        %v355 = vmax.f32 %v354, 0.0
        %s356 = scalar_lea.vmem %s230, 8 [#allocation9]
        %357 = vst [vmem:[%s356] sm:$0x3] %v355
        %v358 = vld [vmem:[%s207] sm:$0x3]
        %s359 = sld [smem:[#allocation2 + $0x5]]
        %v360 = vstv %s359
        %v361 = vmul.f32 %v358, %v360
        %s362 = sld [smem:[#allocation7 + $0x5]]
        %v363 = vstv %s362
        %v364 = vadd.f32 %v361, %v363
        %v365 = vld [vmem:[%s238] sm:$0x3]
        %s366 = sld [smem:[#allocation2 + $0x85]]
        %v367 = vstv %s366
        %v368 = vmul.f32 %v365, %v367
        %v369 = vadd.f32 %v364, %v368
        %v370 = vld [vmem:[%s244] sm:$0x3]
        %s371 = sld [smem:[#allocation2 + $0x105]]
        %v372 = vstv %s371
        %v373 = vmul.f32 %v370, %v372
        %v374 = vadd.f32 %v369, %v373
        %v375 = vld [vmem:[%s250] sm:$0x3]
        %s376 = sld [smem:[#allocation2 + $0x185]]
        %v377 = vstv %s376
        %v378 = vmul.f32 %v375, %v377
        %v379 = vadd.f32 %v374, %v378
        %v380 = vmax.f32 %v379, 0.0
        %s381 = scalar_lea.vmem %s230, 10 [#allocation9]
        %382 = vst [vmem:[%s381] sm:$0x3] %v380
        %v383 = vld [vmem:[%s207] sm:$0x3]
        %s384 = sld [smem:[#allocation2 + $0x6]]
        %v385 = vstv %s384
        %v386 = vmul.f32 %v383, %v385
        %s387 = sld [smem:[#allocation7 + $0x6]]
        %v388 = vstv %s387
        %v389 = vadd.f32 %v386, %v388
        %v390 = vld [vmem:[%s238] sm:$0x3]
        %s391 = sld [smem:[#allocation2 + $0x86]]
        %v392 = vstv %s391
        %v393 = vmul.f32 %v390, %v392
        %v394 = vadd.f32 %v389, %v393
        %v395 = vld [vmem:[%s244] sm:$0x3]
        %s396 = sld [smem:[#allocation2 + $0x106]]
        %v397 = vstv %s396
        %v398 = vmul.f32 %v395, %v397
        %v399 = vadd.f32 %v394, %v398
        %v400 = vld [vmem:[%s250] sm:$0x3]
        %s401 = sld [smem:[#allocation2 + $0x186]]
        %v402 = vstv %s401
        %v403 = vmul.f32 %v400, %v402
        %v404 = vadd.f32 %v399, %v403
        %v405 = vmax.f32 %v404, 0.0
        %s406 = scalar_lea.vmem %s230, 12 [#allocation9]
        %407 = vst [vmem:[%s406] sm:$0x3] %v405
        %v408 = vld [vmem:[%s207] sm:$0x3]
        %s409 = sld [smem:[#allocation2 + $0x7]]
        %v410 = vstv %s409
        %v411 = vmul.f32 %v408, %v410
        %s412 = sld [smem:[#allocation7 + $0x7]]
        %v413 = vstv %s412
        %v414 = vadd.f32 %v411, %v413
        %v415 = vld [vmem:[%s238] sm:$0x3]
        %s416 = sld [smem:[#allocation2 + $0x87]]
        %v417 = vstv %s416
        %v418 = vmul.f32 %v415, %v417
        %v419 = vadd.f32 %v414, %v418
        %v420 = vld [vmem:[%s244] sm:$0x3]
        %s421 = sld [smem:[#allocation2 + $0x107]]
        %v422 = vstv %s421
        %v423 = vmul.f32 %v420, %v422
        %v424 = vadd.f32 %v419, %v423
        %v425 = vld [vmem:[%s250] sm:$0x3]
        %s426 = sld [smem:[#allocation2 + $0x187]]
        %v427 = vstv %s426
        %v428 = vmul.f32 %v425, %v427
        %v429 = vadd.f32 %v424, %v428
        %v430 = vmax.f32 %v429, 0.0
        %s431 = scalar_lea.vmem %s230, 14 [#allocation9]
        %432 = vst [vmem:[%s431] sm:$0x3] %v430
        %s433 = sand.u32 %s114, 1
        %s434 = scalar_lea.sflag [#allocation4], %s433
        %s435 = sand.u32 %s114, 1
        %s436 = smul.addr %s435, 16
        %s437 = scalar_lea.vmem [#allocation9], %s436
        // Predicated region
        $region45: #{tpu_custom_call.1} parent=31 // pred_check
          %p438 = pneg %p124
        $region46: #{tpu_custom_call.1} parent=31 // pred_check_branch
          %440 = sbr.rel (%p438) target = $region48
        $region47: #{tpu_custom_call.1} parent=31 // pred_region
          %s442 = ssub.s32 256, 256
          %443 = vsyncadd %s434, %s442
          %s444 = smul.addr %s26, 8
          %s445 = sadd.s32 %s27, %s444
          %s446 = smul.addr %s445, 32
          %s447 = scalar_lea.hbm %s3, %s446
          %s448 = sshll.u32 %s437, 4
          %s449 = int_to_ptr.vmem [resolvable:$true] %s448
          %454 = dma.vmem_to_hbm [thread:$0]  %s449, 256, %s447, %s434, 32, 32, 2
        $region48: #{tpu_custom_call.1} parent=31 // pred_fallthru
          _
      $region32: #{tpu_custom_call.1} parent=5 // pred_fallthru
        _
      %p455 = scmp.le.s32.totalorder 2, %s17
      // Predicated region
      $region49: #{tpu_custom_call.1} parent=5 // pred_check
        %p456 = pneg %p455
      $region50: #{tpu_custom_call.1} parent=5 // pred_check_branch
        %458 = sbr.rel (%p456) target = $region52
      $region51: #{tpu_custom_call.1} parent=5 // pred_region
        %s459 = ssub.s32 %s17, 2
        // Predicated region
        $region53: #{tpu_custom_call.1} parent=51 // pred_check
          %p460 = pneg %p130
        $region54: #{tpu_custom_call.1} parent=51 // pred_check_branch
          %462 = sbr.rel (%p460) target = $region56
        $region55: #{tpu_custom_call.1} parent=51 // pred_region
          %s463 = sand.u32 %s115, 1
          %s464 = scalar_lea.sflag [#allocation4], %s463
          %s465 = sand.u32 %s115, 1
          %s466 = smul.addr %s465, 16
          %s467 = scalar_lea.vmem [#allocation9], %s466
          %468 = dma.done %s464, 256
        $region56: #{tpu_custom_call.1} parent=51 // pred_fallthru
          _
      $region52: #{tpu_custom_call.1} parent=5 // pred_fallthru
        _
    $region6: #{tpu_custom_call.1} parent=1 // loop_footer
      %s21 = sadd.s32 1, %s17
    $region7: #{tpu_custom_call.1} parent=1 // loop_footer_branch
      %16 = sbr.rel target = $region3
    $region8: #{tpu_custom_call.1} parent=1 // loop_exit
      _
    %469 = vsyncpa [#allocation3], 1
    %s470 = scalar_lea.sflag [#allocation3], 1
    %471 = vsyncpa %s470, 1
    %472 = vsyncpa [#allocation4], 1
    %s473 = scalar_lea.sflag [#allocation4], 1
    %474 = vsyncpa %s473, 1
    %475 = vsyncpa [#allocation5], 1
    %s476 = scalar_lea.sflag [#allocation5], 1
    %477 = vsyncpa %s476, 1
    %478 = vsyncpa [#allocation6], 1
    %s479 = scalar_lea.sflag [#allocation6], 1
    %480 = vsyncpa %s479, 1

</llo_original>
